<compile_context>
chip_gen: v7x
topology: tpu7x:2x2x1
jax: 0.10.0
libtpu: 0.0.40
codegen_flags: <defaults>
</compile_context>

<pallas_src>
import functools
import math

import jax
import jax.numpy as jnp
import numpy as np
from jax.experimental import pallas as pl
from jax.experimental.pallas import tpu as pltpu


# -----------------------------------------------------------------------------
# Kernel 1: fused sparse attention over the selected (top-u) queries.
# -----------------------------------------------------------------------------
def _sparse_attn_kernel(q_ref, k_ref, v_ref, pos_ref, o_ref,
                        m_sc, l_sc, acc_sc, *, scale, mask_flag):
    t = pl.program_id(1)

    @pl.when(t == 0)
    def _init():
        m_sc[...] = jnp.full(m_sc.shape, -jnp.inf, jnp.float32)
        l_sc[...] = jnp.zeros(l_sc.shape, jnp.float32)
        acc_sc[...] = jnp.zeros(acc_sc.shape, jnp.float32)

    q = q_ref[...]                        # (u_pad, D)
    k = k_ref[...]                        # (tkv, D)
    v = v_ref[...]                        # (tkv, D)
    u_pad = q.shape[0]
    tkv = k.shape[0]

    # scores = (Q_sel @ K^T) * scale ; transpose folded into dot_general (MXU).
    s = jax.lax.dot_general(
        q, k, (((1,), (1,)), ((), ())),
        preferred_element_type=jnp.float32) * scale            # (u_pad, tkv)

    if mask_flag:
        # ProbMask: key position must be <= the original position of the query.
        qpos = pos_ref[...]                                     # (u_pad, 1) int32
        kpos = t * tkv + jax.lax.broadcasted_iota(jnp.int32, (u_pad, tkv), 1)
        s = jnp.where(kpos <= qpos, s, -jnp.inf)

    # Online (flash-style) softmax accumulation across key tiles.
    m_prev = m_sc[...]
    m_new = jnp.maximum(m_prev, s.max(axis=-1, keepdims=True))
    alpha = jnp.exp(m_prev - m_new)
    p = jnp.exp(s - m_new)
    l_sc[...] = alpha * l_sc[...] + p.sum(axis=-1, keepdims=True)
    acc_sc[...] = alpha * acc_sc[...] + jnp.dot(
        p.astype(v.dtype), v, preferred_element_type=jnp.float32)
    m_sc[...] = m_new

    @pl.when(t == pl.num_programs(1) - 1)
    def _finalize():
        o_ref[...] = (acc_sc[...] / l_sc[...]).astype(o_ref.dtype)


def _sparse_attention(q_sel, keys, values, pos, *, scale, mask_flag, tkv=128):
    B, u_pad, D = q_sel.shape
    _, L_K, _ = keys.shape
    tkv = min(tkv, L_K)
    assert L_K % tkv == 0, "L_K must be a multiple of the key tile size"

    kernel = functools.partial(_sparse_attn_kernel, scale=scale,
                               mask_flag=mask_flag)
    cost = pl.CostEstimate(
        flops=4 * B * u_pad * L_K * D,                 # QK^T + PV
        transcendentals=B * u_pad * L_K,               # exp
        bytes_accessed=4 * B * (2 * u_pad * D + 2 * L_K * D + u_pad))

    return pl.pallas_call(
        kernel,
        out_shape=jax.ShapeDtypeStruct((B, u_pad, D), q_sel.dtype),
        grid_spec=pltpu.PrefetchScalarGridSpec(
            num_scalar_prefetch=0,
            grid=(B, L_K // tkv),
            in_specs=[
                pl.BlockSpec((None, u_pad, D), lambda b, t: (b, 0, 0)),
                pl.BlockSpec((None, tkv, D), lambda b, t: (b, t, 0)),
                pl.BlockSpec((None, tkv, D), lambda b, t: (b, t, 0)),
                pl.BlockSpec((None, u_pad, 1), lambda b, t: (b, 0, 0)),
            ],
            out_specs=pl.BlockSpec((None, u_pad, D), lambda b, t: (b, 0, 0)),
            scratch_shapes=[
                pltpu.VMEM((u_pad, 1), jnp.float32),   # running max
                pltpu.VMEM((u_pad, 1), jnp.float32),   # running denom
                pltpu.VMEM((u_pad, D), jnp.float32),   # output accumulator
            ],
        ),
        compiler_params=pltpu.CompilerParams(
            dimension_semantics=("parallel", "arbitrary"),
            vmem_limit_bytes=48 * 1024 * 1024,
        ),
        cost_estimate=cost,
    )(q_sel, keys, values, pos)


# -----------------------------------------------------------------------------
# Kernel 2: initial context for the masked path: V.cumsum(dim=-2), tiled scan.
# -----------------------------------------------------------------------------
def _cumsum_kernel(v_ref, o_ref, carry_ref):
    t = pl.program_id(1)

    @pl.when(t == 0)
    def _init():
        carry_ref[...] = jnp.zeros(carry_ref.shape, jnp.float32)

    v = v_ref[...].astype(jnp.float32)                          # (tl, D)
    tl = v.shape[0]
    row = jax.lax.broadcasted_iota(jnp.int32, (tl, tl), 0)
    col = jax.lax.broadcasted_iota(jnp.int32, (tl, tl), 1)
    tril = (col <= row).astype(jnp.float32)
    # In-tile inclusive cumsum as a lower-triangular matmul (MXU, XLU-free).
    local = jnp.dot(tril, v, preferred_element_type=jnp.float32)
    o_ref[...] = (local + carry_ref[...]).astype(o_ref.dtype)
    carry_ref[...] = carry_ref[...] + jnp.sum(v, axis=0, keepdims=True)


def _cumsum_context(values, *, tl=128):
    B, L, D = values.shape
    tl = min(tl, L)
    assert L % tl == 0
    return pl.pallas_call(
        _cumsum_kernel,
        out_shape=jax.ShapeDtypeStruct((B, L, D), values.dtype),
        grid_spec=pltpu.PrefetchScalarGridSpec(
            num_scalar_prefetch=0,
            grid=(B, L // tl),
            in_specs=[pl.BlockSpec((None, tl, D), lambda b, t: (b, t, 0))],
            out_specs=pl.BlockSpec((None, tl, D), lambda b, t: (b, t, 0)),
            scratch_shapes=[pltpu.VMEM((1, D), jnp.float32)],   # running carry
        ),
        compiler_params=pltpu.CompilerParams(
            dimension_semantics=("parallel", "arbitrary"),
            vmem_limit_bytes=48 * 1024 * 1024,
        ),
    )(values)


# -----------------------------------------------------------------------------
# ProbAttention.forward equivalent (eval mode: dropout is a no-op in the spec).
# -----------------------------------------------------------------------------
def prob_attention_forward(queries, keys, values, rng_key, *,
                           factor=5, scale=None, mask_flag=True):
    B, L_Q, D = queries.shape
    _, L_K, _ = keys.shape

    U_part = min(factor * int(np.ceil(np.log(L_K))), L_K)
    u = min(factor * int(np.ceil(np.log(L_Q))), L_Q)

    # --- _prob_QK: sampling + sparsity measurement + top-u selection ---------
    # TODO(synk): randint sampling, K_sample gather and top-k selection are
    # data-dependent gather/sort with no clean Pallas equivalent; kept in JAX.
    index_sample = jax.random.randint(rng_key, (L_Q, U_part), 0, L_K)
    K_sample = keys[:, index_sample, :]                          # (B, L_Q, U_part, D)
    Q_K_sample = jnp.einsum('bqe,bqse->bqs', queries, K_sample)  # (B, L_Q, U_part)
    M = Q_K_sample.max(axis=-1) - Q_K_sample.sum(axis=-1) / L_K
    M_top = jax.lax.top_k(M, u)[1]                               # (B, u)
    Q_reduce = jnp.take_along_axis(queries, M_top[..., None], axis=1)  # (B, u, D)

    scl = float(scale) if scale is not None else 1.0 / math.sqrt(D)

    # --- pad selected-query count to a sublane multiple for the kernel -------
    u_pad = max(8, ((u + 7) // 8) * 8)
    pad = u_pad - u
    q_sel = jnp.pad(Q_reduce, ((0, 0), (0, pad), (0, 0))) if pad else Q_reduce
    pos = jnp.pad(M_top, ((0, 0), (0, pad))) if pad else M_top
    pos = pos.astype(jnp.int32)[..., None]                       # (B, u_pad, 1)

    # --- fused scores * scale + ProbMask + softmax + attn @ V (Pallas) -------
    out_top = _sparse_attention(q_sel, keys, values, pos,
                                scale=scl, mask_flag=mask_flag)  # (B, u_pad, D)
    out_top = out_top[:, :u, :]

    # --- initial context ------------------------------------------------------
    if mask_flag:
        assert L_Q == L_K
        context = _cumsum_context(values)                        # V.cumsum(dim=-2)
    else:
        context = jnp.broadcast_to(
            values.mean(axis=-2, keepdims=True), (B, L_Q, D)).astype(values.dtype)

    # --- scatter updated rows back at the selected query positions -----------
    # TODO(synk): dynamic-index scatter kept in JAX glue.
    context = context.at[jnp.arange(B)[:, None], M_top, :].set(
        out_top.astype(context.dtype))
    return context, None


# -----------------------------------------------------------------------------
# Pure-JAX reference (mirrors the PyTorch module, given the same sampled keys).
# -----------------------------------------------------------------------------
def _prob_attention_reference(queries, keys, values, index_sample, *,
                              factor=5, scale=None, mask_flag=True):
    B, L_Q, D = queries.shape
    _, L_K, _ = keys.shape
    u = min(factor * int(np.ceil(np.log(L_Q))), L_Q)

    K_sample = keys[:, index_sample, :]
    Q_K_sample = jnp.einsum('bqe,bqse->bqs', queries, K_sample)
    M = Q_K_sample.max(axis=-1) - Q_K_sample.sum(axis=-1) / L_K
    M_top = jax.lax.top_k(M, u)[1]
    Q_reduce = jnp.take_along_axis(queries, M_top[..., None], axis=1)

    scl = float(scale) if scale is not None else 1.0 / math.sqrt(D)
    scores = jnp.einsum('bud,bkd->buk', Q_reduce, keys,
                        precision=jax.lax.Precision.HIGHEST) * scl

    if mask_flag:
        kpos = jnp.arange(L_K)[None, None, :]
        qpos = M_top[:, :, None]
        scores = jnp.where(kpos <= qpos, scores, -jnp.inf)
        context = jnp.cumsum(values, axis=-2)
    else:
        context = jnp.broadcast_to(values.mean(axis=-2, keepdims=True),
                                   (B, L_Q, D))

    attn = jax.nn.softmax(scores, axis=-1)
    upd = jnp.einsum('buk,bkd->bud', attn, values,
                     precision=jax.lax.Precision.HIGHEST)
    context = context.at[jnp.arange(B)[:, None], M_top, :].set(
        upd.astype(context.dtype))
    return context, None


if __name__ == "__main__":
    # Small-but-representative shapes: B=2, L_Q=L_K=256, D=128.
    # L=256 keeps the top-u selection genuinely sparse (u = 5*ceil(ln 256) = 30 < 256)
    # and gives 2 key tiles so the online-softmax accumulator path is exercised;
    # D=128 / key tile=128 keep every block lane/sublane aligned (lane-dense output).
    B, L, D = 2, 256, 128
    factor = 5

    root = jax.random.PRNGKey(0)
    kq, kk, kv, ks = jax.random.split(root, 4)
    queries = jax.random.normal(kq, (B, L, D), dtype=jnp.float32)
    keys = jax.random.normal(kk, (B, L, D), dtype=jnp.float32)
    values = jax.random.normal(kv, (B, L, D), dtype=jnp.float32)

    context, attn = prob_attention_forward(queries, keys, values, ks,
                                           factor=factor)
    context = jax.block_until_ready(context)
    assert context.shape == (B, L, D)
    assert attn is None

    # Reference with identical sampled key indices.
    U_part = min(factor * int(np.ceil(np.log(L))), L)
    index_sample = jax.random.randint(ks, (L, U_part), 0, L)
    ref, _ = _prob_attention_reference(queries, keys, values, index_sample,
                                       factor=factor)
    max_err = float(jnp.max(jnp.abs(context - ref)))
    assert jnp.allclose(context, ref, atol=2e-3, rtol=2e-3), max_err

    print("KERNEL_OK")
</pallas_src>

<mosaic_0001>
module attributes {stable_mosaic.version = 11 : i64} {
  func.func @_sparse_attn_kernel(%arg0: i32, %arg1: i32, %arg2: memref<1x32x128xf32, #tpu.memory_space<vmem>>, %arg3: memref<1x128x128xf32, #tpu.memory_space<vmem>>, %arg4: memref<1x128x128xf32, #tpu.memory_space<vmem>>, %arg5: memref<1x32x1xi32, #tpu.memory_space<vmem>>, %arg6: memref<1x32x128xf32, #tpu.memory_space<vmem>>, %arg7: memref<32x1xf32, #tpu.memory_space<vmem>>, %arg8: memref<32x1xf32, #tpu.memory_space<vmem>>, %arg9: memref<32x128xf32, #tpu.memory_space<vmem>>) attributes {dimension_semantics = [#tpu.dimension_semantics<parallel>, #tpu.dimension_semantics<arbitrary>], iteration_bounds = array<i64: 2, 2>, scalar_prefetch = 0 : i64, scratch_operands = 3 : i64, tpu.core_type = #tpu.core_type<tc>, window_params = [{transform_indices = @transform_0, window_bounds = array<i64: 1, 32, 128>}, {transform_indices = @transform_1, window_bounds = array<i64: 1, 128, 128>}, {transform_indices = @transform_2, window_bounds = array<i64: 1, 128, 128>}, {transform_indices = @transform_3, window_bounds = array<i64: 1, 32, 1>}, {transform_indices = @transform_4, window_bounds = array<i64: 1, 32, 128>}]} {
    %c0_i32 = arith.constant 0 : i32
    %0 = arith.cmpi eq, %arg1, %c0_i32 : i32
    %1 = arith.extui %0 : i1 to i32
    %c0_i32_0 = arith.constant 0 : i32
    %2 = arith.cmpi ne, %1, %c0_i32_0 : i32
    scf.if %2 {
      %cst_30 = arith.constant 0xFF800000 : f32
      %47 = vector.broadcast %cst_30 : f32 to vector<32x1xf32>
      %c0_31 = arith.constant 0 : index
      %c0_32 = arith.constant 0 : index
      %48 = vector.load %arg7[%c0_31, %c0_32] : memref<32x1xf32, #tpu.memory_space<vmem>>, vector<32x1xf32>
      tpu.vector_store %arg7[%c0_31, %c0_32], %47 {strides = array<i32>} : memref<32x1xf32, #tpu.memory_space<vmem>>, vector<32x1xf32>,
      %cst_33 = arith.constant 0.000000e+00 : f32
      %49 = vector.broadcast %cst_33 : f32 to vector<32x1xf32>
      %c0_34 = arith.constant 0 : index
      %c0_35 = arith.constant 0 : index
      %50 = vector.load %arg8[%c0_34, %c0_35] : memref<32x1xf32, #tpu.memory_space<vmem>>, vector<32x1xf32>
      tpu.vector_store %arg8[%c0_34, %c0_35], %49 {strides = array<i32>} : memref<32x1xf32, #tpu.memory_space<vmem>>, vector<32x1xf32>,
      %cst_36 = arith.constant 0.000000e+00 : f32
      %51 = vector.broadcast %cst_36 : f32 to vector<32x128xf32>
      %c0_37 = arith.constant 0 : index
      %c0_38 = arith.constant 0 : index
      %52 = vector.load %arg9[%c0_37, %c0_38] : memref<32x128xf32, #tpu.memory_space<vmem>>, vector<32x128xf32>
      tpu.vector_store %arg9[%c0_37, %c0_38], %51 {strides = array<i32>} : memref<32x128xf32, #tpu.memory_space<vmem>>, vector<32x128xf32>,
    } else {
    }
    %c0 = arith.constant 0 : index
    %c0_1 = arith.constant 0 : index
    %c0_2 = arith.constant 0 : index
    %3 = vector.load %arg2[%c0, %c0_1, %c0_2] : memref<1x32x128xf32, #tpu.memory_space<vmem>>, vector<1x32x128xf32>
    %4 = vector.shape_cast %3 : vector<1x32x128xf32> to vector<32x128xf32>
    %c0_3 = arith.constant 0 : index
    %c0_4 = arith.constant 0 : index
    %c0_5 = arith.constant 0 : index
    %5 = vector.load %arg3[%c0_3, %c0_4, %c0_5] : memref<1x128x128xf32, #tpu.memory_space<vmem>>, vector<1x128x128xf32>
    %6 = vector.shape_cast %5 : vector<1x128x128xf32> to vector<128x128xf32>
    %c0_6 = arith.constant 0 : index
    %c0_7 = arith.constant 0 : index
    %c0_8 = arith.constant 0 : index
    %7 = vector.load %arg4[%c0_6, %c0_7, %c0_8] : memref<1x128x128xf32, #tpu.memory_space<vmem>>, vector<1x128x128xf32>
    %8 = vector.shape_cast %7 : vector<1x128x128xf32> to vector<128x128xf32>
    %cst = arith.constant dense<0.000000e+00> : vector<32x128xf32>
    %9 = tpu.matmul %4, %6, %cst {dimension_numbers = #tpu.dot_dimension_numbers<[1], [1], [0], [0], [0, 0, 1, 0], [], []>} : vector<32x128xf32>, vector<128x128xf32>, vector<32x128xf32> -> vector<32x128xf32>
    %cst_9 = arith.constant 0.0883883461 : f32
    %10 = vector.broadcast %cst_9 : f32 to vector<32x128xf32>
    %11 = arith.mulf %9, %10 : vector<32x128xf32>
    %c0_10 = arith.constant 0 : index
    %c0_11 = arith.constant 0 : index
    %c0_12 = arith.constant 0 : index
    %12 = vector.load %arg5[%c0_10, %c0_11, %c0_12] : memref<1x32x1xi32, #tpu.memory_space<vmem>>, vector<1x32x1xi32>
    %13 = vector.shape_cast %12 : vector<1x32x1xi32> to vector<32x1xi32>
    %c128_i32 = arith.constant 128 : i32
    %14 = arith.muli %arg1, %c128_i32 : i32
    %15 = tpu.iota {dimensions = array<i32: 1>} : vector<32x128xi32>
    %16 = vector.broadcast %14 : i32 to vector<32x128xi32>
    %17 = arith.addi %16, %15 : vector<32x128xi32>
    %18 = vector.broadcast %13 : vector<32x1xi32> to vector<32x128xi32>
    %19 = arith.cmpi sle, %17, %18 : vector<32x128xi32>
    %cst_13 = arith.constant 0xFF800000 : f32
    %20 = vector.broadcast %cst_13 : f32 to vector<32x128xf32>
    %21 = arith.select %19, %11, %20 : vector<32x128xi1>, vector<32x128xf32>
    %c0_14 = arith.constant 0 : index
    %c0_15 = arith.constant 0 : index
    %22 = vector.load %arg7[%c0_14, %c0_15] : memref<32x1xf32, #tpu.memory_space<vmem>>, vector<32x1xf32>
    %cst_16 = arith.constant dense<0xFF800000> : vector<32xf32>
    %23 = vector.multi_reduction <maximumf>, %21, %cst_16 [1] : vector<32x128xf32> to vector<32xf32>
    %24 = vector.shape_cast %23 : vector<32xf32> to vector<32x1xf32>
    %25 = arith.maximumf %22, %24 : vector<32x1xf32>
    %26 = arith.subf %22, %25 : vector<32x1xf32>
    %27 = math.exp %26 : vector<32x1xf32>
    %28 = vector.broadcast %25 : vector<32x1xf32> to vector<32x128xf32>
    %29 = arith.subf %21, %28 : vector<32x128xf32>
    %30 = math.exp %29 : vector<32x128xf32>
    %c0_17 = arith.constant 0 : index
    %c0_18 = arith.constant 0 : index
    %31 = vector.load %arg8[%c0_17, %c0_18] : memref<32x1xf32, #tpu.memory_space<vmem>>, vector<32x1xf32>
    %32 = arith.mulf %27, %31 : vector<32x1xf32>
    %cst_19 = arith.constant dense<0.000000e+00> : vector<32xf32>
    %33 = vector.multi_reduction <add>, %30, %cst_19 [1] : vector<32x128xf32> to vector<32xf32>
    %34 = vector.shape_cast %33 : vector<32xf32> to vector<32x1xf32>
    %35 = arith.addf %32, %34 : vector<32x1xf32>
    %c0_20 = arith.constant 0 : index
    %c0_21 = arith.constant 0 : index
    %36 = vector.load %arg8[%c0_20, %c0_21] : memref<32x1xf32, #tpu.memory_space<vmem>>, vector<32x1xf32>
    tpu.vector_store %arg8[%c0_20, %c0_21], %35 {strides = array<i32>} : memref<32x1xf32, #tpu.memory_space<vmem>>, vector<32x1xf32>,
    %c0_22 = arith.constant 0 : index
    %c0_23 = arith.constant 0 : index
    %37 = vector.load %arg9[%c0_22, %c0_23] : memref<32x128xf32, #tpu.memory_space<vmem>>, vector<32x128xf32>
    %38 = vector.broadcast %27 : vector<32x1xf32> to vector<32x128xf32>
    %39 = arith.mulf %38, %37 : vector<32x128xf32>
    %cst_24 = arith.constant dense<0.000000e+00> : vector<32x128xf32>
    %40 = tpu.matmul %30, %8, %cst_24 {dimension_numbers = #tpu.dot_dimension_numbers<[1], [0], [0], [1], [0, 0, 1, 1], [], []>} : vector<32x128xf32>, vector<128x128xf32>, vector<32x128xf32> -> vector<32x128xf32>
    %41 = arith.addf %39, %40 : vector<32x128xf32>
    %c0_25 = arith.constant 0 : index
    %c0_26 = arith.constant 0 : index
    %42 = vector.load %arg9[%c0_25, %c0_26] : memref<32x128xf32, #tpu.memory_space<vmem>>, vector<32x128xf32>
    tpu.vector_store %arg9[%c0_25, %c0_26], %41 {strides = array<i32>} : memref<32x128xf32, #tpu.memory_space<vmem>>, vector<32x128xf32>,
    %c0_27 = arith.constant 0 : index
    %c0_28 = arith.constant 0 : index
    %43 = vector.load %arg7[%c0_27, %c0_28] : memref<32x1xf32, #tpu.memory_space<vmem>>, vector<32x1xf32>
    tpu.vector_store %arg7[%c0_27, %c0_28], %25 {strides = array<i32>} : memref<32x1xf32, #tpu.memory_space<vmem>>, vector<32x1xf32>,
    %c1_i32 = arith.constant 1 : i32
    %44 = arith.cmpi eq, %arg1, %c1_i32 : i32
    %45 = arith.extui %44 : i1 to i32
    %c0_i32_29 = arith.constant 0 : i32
    %46 = arith.cmpi ne, %45, %c0_i32_29 : i32
    scf.if %46 {
      %c0_30 = arith.constant 0 : index
      %c0_31 = arith.constant 0 : index
      %47 = vector.load %arg9[%c0_30, %c0_31] : memref<32x128xf32, #tpu.memory_space<vmem>>, vector<32x128xf32>
      %c0_32 = arith.constant 0 : index
      %c0_33 = arith.constant 0 : index
      %48 = vector.load %arg8[%c0_32, %c0_33] : memref<32x1xf32, #tpu.memory_space<vmem>>, vector<32x1xf32>
      %49 = vector.broadcast %48 : vector<32x1xf32> to vector<32x128xf32>
      %50 = arith.divf %47, %49 : vector<32x128xf32>
      %c0_34 = arith.constant 0 : index
      %c0_35 = arith.constant 0 : index
      %c0_36 = arith.constant 0 : index
      %51 = vector.load %arg6[%c0_34, %c0_35, %c0_36] : memref<1x32x128xf32, #tpu.memory_space<vmem>>, vector<1x32x128xf32>
      %52 = vector.shape_cast %51 : vector<1x32x128xf32> to vector<32x128xf32>
      %53 = vector.shape_cast %50 : vector<32x128xf32> to vector<1x32x128xf32>
      tpu.vector_store %arg6[%c0_34, %c0_35, %c0_36], %53 {strides = array<i32>} : memref<1x32x128xf32, #tpu.memory_space<vmem>>, vector<1x32x128xf32>,
    } else {
    }
    return
  }
  func.func @transform_0(%arg0: i32, %arg1: i32) -> (i32, i32, i32) {
    %c0_i32 = arith.constant 0 : i32
    %c0_i32_0 = arith.constant 0 : i32
    %c0_i32_1 = arith.constant 0 : i32
    return %arg0, %c0_i32, %c0_i32_0 : i32, i32, i32
  }
  func.func @transform_1(%arg0: i32, %arg1: i32) -> (i32, i32, i32) {
    %c0_i32 = arith.constant 0 : i32
    %c0_i32_0 = arith.constant 0 : i32
    return %arg0, %arg1, %c0_i32 : i32, i32, i32
  }
  func.func @transform_2(%arg0: i32, %arg1: i32) -> (i32, i32, i32) {
    %c0_i32 = arith.constant 0 : i32
    %c0_i32_0 = arith.constant 0 : i32
    return %arg0, %arg1, %c0_i32 : i32, i32, i32
  }
  func.func @transform_3(%arg0: i32, %arg1: i32) -> (i32, i32, i32) {
    %c0_i32 = arith.constant 0 : i32
    %c0_i32_0 = arith.constant 0 : i32
    %c0_i32_1 = arith.constant 0 : i32
    return %arg0, %c0_i32, %c0_i32_0 : i32, i32, i32
  }
  func.func @transform_4(%arg0: i32, %arg1: i32) -> (i32, i32, i32) {
    %c0_i32 = arith.constant 0 : i32
    %c0_i32_0 = arith.constant 0 : i32
    %c0_i32_1 = arith.constant 0 : i32
    return %arg0, %c0_i32, %c0_i32_0 : i32, i32, i32
  }
}

</mosaic_0001>

<llo_original>
// kernel: tpu_custom_call.1
$region0: #{tpu_custom_call.1}
  #allocation0 [shape = 'u32[]', space=smem, size = 0x4, offset = 0x4, fixed_abs, tag = 'smem constant byte address 0x4 - core index']
  #allocation1 [shape = 'u32[144,128]{1,0:T(1,128)}', space=vmem, size = 0x12000, scoped, tag = 'internal scratch']
  #allocation2 [shape = 'f32[32,1]{1,0:T(8,128)}', space=vmem, size = 0x4000, scoped, tag = 'scratch operand']
  #allocation3 [shape = 'f32[32,1]{1,0:T(8,128)}', space=vmem, size = 0x4000, scoped, tag = 'scratch operand']
  #allocation4 [shape = 'f32[32,128]{1,0:T(8,128)}', space=vmem, size = 0x4000, scoped, tag = 'scratch operand']
  %s0 = inlined_call_operand.vmem [shape: f32[2,32,128], index: 0, kind: input, shape index: {}]
  %s1 = inlined_call_operand.hbm [shape: f32[2,256,128], index: 1, kind: input, shape index: {}]
  %s2 = inlined_call_operand.hbm [shape: f32[2,256,128], index: 2, kind: input, shape index: {}]
  %s3 = inlined_call_operand.vmem [shape: s32[2,32,1], index: 3, kind: input, shape index: {}]
  %s4 = inlined_call_operand.hbm [shape: f32[2,32,128], index: 4, kind: output, shape index: {}]
  %s5 = sld [smem:[#allocation0]]
  $region65: #{tpu_custom_call.1} parent=0
    _
  %s7 = ssub.s32 1, %s5
  %s8 = scalar_select 0, %s7, %s5
  $region1: #{tpu_custom_call.1} parent=0
    #allocation5 [shape = 'u8[131072]{0}', space=vmem, size = 0x20000, scoped, tag = 'input window, operand 1']
    #allocation6 [shape = 's32[2]{0}', space=sflag, size = 0x8, scoped, tag = 'scoped memory for tpu_custom_call.1']
    #allocation7 [shape = 's32[2]{0}', space=sflag, size = 0x8, scoped, tag = 'scoped memory for tpu_custom_call.1']
    #allocation8 [shape = 'u8[131072]{0}', space=vmem, size = 0x20000, scoped, tag = 'input window, operand 2']
    #allocation9 [shape = 's32[2]{0}', space=sflag, size = 0x8, scoped, tag = 'scoped memory for tpu_custom_call.1']
    #allocation10 [shape = 'u8[32768]{0}', space=vmem, size = 0x8000, scoped, tag = 'output window, operand 0']
    %9 = vsyncpa [#allocation6], 0
    %s10 = scalar_lea.sflag [#allocation6], 1
    %11 = vsyncpa %s10, 0
    %12 = vsyncpa [#allocation9], 0
    %s13 = scalar_lea.sflag [#allocation9], 1
    %14 = vsyncpa %s13, 0
    %15 = vsyncpa [#allocation7], 0
    %s16 = scalar_lea.sflag [#allocation7], 1
    %17 = vsyncpa %s16, 0
    loop: start=0, step=1, limit=6
    $region2: #{tpu_custom_call.1} parent=1 // loop_pre_header
      _
    $region3: #{tpu_custom_call.1} parent=1 // loop_header
      %s19 = sphi 0, %s23
      %p20 = scmp.ge.s32.totalorder %s19, 6
      %s26 = sphi 0, %s38
      %s27 = sphi 0, %s34
      %s28 = sphi 0, %s26
      %s29 = sphi 0, %s27
      %s30 = sphi 0, %s28
      %s31 = sphi 0, %s29
      %s41 = sphi 0, %s43
      %s44 = sphi 0, %s41
      %s45 = sphi 0, %s44
      %s61 = sphi 0, %s45
      %s69 = sphi 0, %s71
      %s72 = sphi 0, %s69
      %s73 = sphi 0, %s72
      %s89 = sphi 0, %s73
      %s97 = sphi 0, %s99
      %s100 = sphi 0, %s97
      %s101 = sphi 0, %s100
      %s117 = sphi 0, %s101
      %s123 = sphi 0, %s125
      %s126 = sphi 0, %s123
      %s127 = sphi 0, %s126
      %s143 = sphi 0, %s127
      %s149 = sphi 0, %s151
      %s152 = sphi 0, %s149
      %s153 = sphi 0, %s152
      %s169 = sphi 0, %s153
    $region4: #{tpu_custom_call.1} parent=1 // loop_header_branch
      %22 = sbr.rel (%p20) target = $region8
    $region5: #{tpu_custom_call.1} parent=1 // loop_body
      %s24 = ssub.s32 %s19, 1
      %s25 = ssub.s32 %s19, 2
      %s32 = sadd.s32 1, %s27
      %p33 = scmp.ge.s32.totalorder %s32, 2
      %s34 = scalar_select %p33, 0, %s32
      %s35 = sadd.s32 1, %s26
      %s36 = scalar_select %p33, %s35, %s26
      %p37 = scmp.ge.s32.totalorder %s36, 2
      %s38 = scalar_select %p37, 0, %s36
      %s39 = ssub.s32 %s26, %s38
      %p40 = scmp.eq.s32.totalorder %s39, 0
      %s42 = sadd.s32 %s41, 1
      %s43 = scalar_select %p40, %s41, %s42
      %p46 = pneg %p40
      %p47 = scmp.eq.s32.totalorder %s19, 3
      %p48 = por %p46, %p47
      %p49 = scmp.ne.s32.totalorder %s41, %s44
      %p50 = scmp.eq.s32.totalorder %s19, 0
      %p51 = por %p49, %p50
      %p52 = scmp.ne.s32.totalorder %s41, %s44
      %p53 = scmp.eq.s32.totalorder %s24, 3
      %p54 = por %p52, %p53
      %p55 = scmp.ne.s32.totalorder %s44, %s45
      %p56 = scmp.eq.s32.totalorder %s24, 0
      %p57 = por %p55, %p56
      %p58 = scmp.ne.s32.totalorder %s44, %s45
      %p59 = scmp.eq.s32.totalorder %s25, 3
      %p60 = por %p58, %p59
      %p62 = scmp.ne.s32.totalorder %s45, %s61
      %p63 = scmp.eq.s32.totalorder %s25, 0
      %p64 = por %p62, %p63
      %s65 = ssub.s32 %s26, %s38
      %s66 = ssub.s32 %s27, %s34
      %s67 = sor.u32 %s65, %s66
      %p68 = scmp.eq.s32.totalorder %s67, 0
      %s70 = sadd.s32 %s69, 1
      %s71 = scalar_select %p68, %s69, %s70
      %p74 = pneg %p68
      %p75 = scmp.eq.s32.totalorder %s19, 3
      %p76 = por %p74, %p75
      %p77 = scmp.ne.s32.totalorder %s69, %s72
      %p78 = scmp.eq.s32.totalorder %s19, 0
      %p79 = por %p77, %p78
      %p80 = scmp.ne.s32.totalorder %s69, %s72
      %p81 = scmp.eq.s32.totalorder %s24, 3
      %p82 = por %p80, %p81
      %p83 = scmp.ne.s32.totalorder %s72, %s73
      %p84 = scmp.eq.s32.totalorder %s24, 0
      %p85 = por %p83, %p84
      %p86 = scmp.ne.s32.totalorder %s72, %s73
      %p87 = scmp.eq.s32.totalorder %s25, 3
      %p88 = por %p86, %p87
      %p90 = scmp.ne.s32.totalorder %s73, %s89
      %p91 = scmp.eq.s32.totalorder %s25, 0
      %p92 = por %p90, %p91
      %s93 = ssub.s32 %s26, %s38
      %s94 = ssub.s32 %s27, %s34
      %s95 = sor.u32 %s93, %s94
      %p96 = scmp.eq.s32.totalorder %s95, 0
      %s98 = sadd.s32 %s97, 1
      %s99 = scalar_select %p96, %s97, %s98
      %p102 = pneg %p96
      %p103 = scmp.eq.s32.totalorder %s19, 3
      %p104 = por %p102, %p103
      %p105 = scmp.ne.s32.totalorder %s97, %s100
      %p106 = scmp.eq.s32.totalorder %s19, 0
      %p107 = por %p105, %p106
      %p108 = scmp.ne.s32.totalorder %s97, %s100
      %p109 = scmp.eq.s32.totalorder %s24, 3
      %p110 = por %p108, %p109
      %p111 = scmp.ne.s32.totalorder %s100, %s101
      %p112 = scmp.eq.s32.totalorder %s24, 0
      %p113 = por %p111, %p112
      %p114 = scmp.ne.s32.totalorder %s100, %s101
      %p115 = scmp.eq.s32.totalorder %s25, 3
      %p116 = por %p114, %p115
      %p118 = scmp.ne.s32.totalorder %s101, %s117
      %p119 = scmp.eq.s32.totalorder %s25, 0
      %p120 = por %p118, %p119
      %s121 = ssub.s32 %s26, %s38
      %p122 = scmp.eq.s32.totalorder %s121, 0
      %s124 = sadd.s32 %s123, 1
      %s125 = scalar_select %p122, %s123, %s124
      %p128 = pneg %p122
      %p129 = scmp.eq.s32.totalorder %s19, 3
      %p130 = por %p128, %p129
      %p131 = scmp.ne.s32.totalorder %s123, %s126
      %p132 = scmp.eq.s32.totalorder %s19, 0
      %p133 = por %p131, %p132
      %p134 = scmp.ne.s32.totalorder %s123, %s126
      %p135 = scmp.eq.s32.totalorder %s24, 3
      %p136 = por %p134, %p135
      %p137 = scmp.ne.s32.totalorder %s126, %s127
      %p138 = scmp.eq.s32.totalorder %s24, 0
      %p139 = por %p137, %p138
      %p140 = scmp.ne.s32.totalorder %s126, %s127
      %p141 = scmp.eq.s32.totalorder %s25, 3
      %p142 = por %p140, %p141
      %p144 = scmp.ne.s32.totalorder %s127, %s143
      %p145 = scmp.eq.s32.totalorder %s25, 0
      %p146 = por %p144, %p145
      %s147 = ssub.s32 %s26, %s38
      %p148 = scmp.eq.s32.totalorder %s147, 0
      %s150 = sadd.s32 %s149, 1
      %s151 = scalar_select %p148, %s149, %s150
      %p154 = pneg %p148
      %p155 = scmp.eq.s32.totalorder %s19, 3
      %p156 = por %p154, %p155
      %p157 = scmp.ne.s32.totalorder %s149, %s152
      %p158 = scmp.eq.s32.totalorder %s19, 0
      %p159 = por %p157, %p158
      %p160 = scmp.ne.s32.totalorder %s149, %s152
      %p161 = scmp.eq.s32.totalorder %s24, 3
      %p162 = por %p160, %p161
      %p163 = scmp.ne.s32.totalorder %s152, %s153
      %p164 = scmp.eq.s32.totalorder %s24, 0
      %p165 = por %p163, %p164
      %p166 = scmp.ne.s32.totalorder %s152, %s153
      %p167 = scmp.eq.s32.totalorder %s25, 3
      %p168 = por %p166, %p167
      %p170 = scmp.ne.s32.totalorder %s153, %s169
      %p171 = scmp.eq.s32.totalorder %s25, 0
      %p172 = por %p170, %p171
      %p173 = scmp.le.s32.totalorder 1, %s19
      %p174 = scmp.lt.s32.totalorder %s19, 5
      %p175 = pnand %p173, %p174
      %p176 = pneg %p175
      // Predicated region
      $region9: #{tpu_custom_call.1} parent=5 // pred_check
        _
      $region10: #{tpu_custom_call.1} parent=5 // pred_check_branch
        %178 = sbr.rel (%p175) target = $region12
      $region11: #{tpu_custom_call.1} parent=5 // pred_region
        %s179 = ssub.s32 %s19, 1
      $region12: #{tpu_custom_call.1} parent=5 // pred_fallthru
        _
      %p180 = scmp.lt.s32.totalorder %s19, 4
      // Predicated region
      $region13: #{tpu_custom_call.1} parent=5 // pred_check
        %p181 = pneg %p180
      $region14: #{tpu_custom_call.1} parent=5 // pred_check_branch
        %183 = sbr.rel (%p181) target = $region16
      $region15: #{tpu_custom_call.1} parent=5 // pred_region
        // Predicated region
        $region17: #{tpu_custom_call.1} parent=15 // pred_check
          %p184 = pneg %p51
        $region18: #{tpu_custom_call.1} parent=15 // pred_check_branch
          %186 = sbr.rel (%p184) target = $region20
        $region19: #{tpu_custom_call.1} parent=15 // pred_region
          %p187 = scmp.lt.s32.totalorder %s26, 1
          %s188 = scalar_select %p187, %s26, 1
          %s189 = smul.addr %s188, 4
          %s190 = smul.addr %s189, 8
          %s191 = scalar_lea.vmem %s0, %s190
        $region20: #{tpu_custom_call.1} parent=15 // pred_fallthru
          _
        // Predicated region
        $region21: #{tpu_custom_call.1} parent=15 // pred_check
          %p192 = pneg %p79
        $region22: #{tpu_custom_call.1} parent=15 // pred_check_branch
          %194 = sbr.rel (%p192) target = $region24
        $region23: #{tpu_custom_call.1} parent=15 // pred_region
          %s195 = sand.u32 %s69, 1
          %s196 = scalar_lea.sflag [#allocation6], %s195
          %s197 = sand.u32 %s69, 1
          %s198 = smul.addr %s197, 128
          %s199 = scalar_lea.vmem [#allocation5], %s198
          %s200 = smul.u32 16, %s27
          %s202 = ssub.s32 2048, 2048
          %203 = vsyncadd %s196, %s202
          %s204 = smul.addr %s26, 32
          %s205 = sadd.s32 %s200, %s204
          %s206 = smul.addr %s205, 128
          %s207 = scalar_lea.hbm %s1, %s206
          %s208 = sshll.u32 %s199, 4
          %s209 = int_to_ptr.vmem [resolvable:$true] %s208
          %214 = dma.hbm_to_vmem [thread:$0]  %s207, 2048, %s209, %s196, 128, 128, 8
        $region24: #{tpu_custom_call.1} parent=15 // pred_fallthru
          _
        // Predicated region
        $region25: #{tpu_custom_call.1} parent=15 // pred_check
          %p215 = pneg %p107
        $region26: #{tpu_custom_call.1} parent=15 // pred_check_branch
          %217 = sbr.rel (%p215) target = $region28
        $region27: #{tpu_custom_call.1} parent=15 // pred_region
          %s218 = sand.u32 %s97, 1
          %s219 = scalar_lea.sflag [#allocation9], %s218
          %s220 = sand.u32 %s97, 1
          %s221 = smul.addr %s220, 128
          %s222 = scalar_lea.vmem [#allocation8], %s221
          %s223 = smul.u32 16, %s27
          %s225 = ssub.s32 2048, 2048
          %226 = vsyncadd %s219, %s225
          %s227 = smul.addr %s26, 32
          %s228 = sadd.s32 %s223, %s227
          %s229 = smul.addr %s228, 128
          %s230 = scalar_lea.hbm %s2, %s229
          %s231 = sshll.u32 %s222, 4
          %s232 = int_to_ptr.vmem [resolvable:$true] %s231
          %237 = dma.hbm_to_vmem [thread:$0]  %s230, 2048, %s232, %s219, 128, 128, 8
        $region28: #{tpu_custom_call.1} parent=15 // pred_fallthru
          _
        // Predicated region
        $region29: #{tpu_custom_call.1} parent=15 // pred_check
          %p238 = pneg %p133
        $region30: #{tpu_custom_call.1} parent=15 // pred_check_branch
          %240 = sbr.rel (%p238) target = $region32
        $region31: #{tpu_custom_call.1} parent=15 // pred_region
          %p241 = scmp.lt.s32.totalorder %s26, 1
          %s242 = scalar_select %p241, %s26, 1
          %s243 = smul.addr %s242, 4
          %s244 = smul.addr %s243, 8
          %s245 = scalar_lea.vmem %s3, %s244
        $region32: #{tpu_custom_call.1} parent=15 // pred_fallthru
          _
      $region16: #{tpu_custom_call.1} parent=5 // pred_fallthru
        _
      %p246 = scmp.le.s32.totalorder 1, %s19
      %p247 = scmp.lt.s32.totalorder %s19, 5
      %p248 = pnand %p246, %p247
      %p249 = pneg %p248
      // Predicated region
      $region33: #{tpu_custom_call.1} parent=5 // pred_check
        _
      $region34: #{tpu_custom_call.1} parent=5 // pred_check_branch
        %251 = sbr.rel (%p248) target = $region36
      $region35: #{tpu_custom_call.1} parent=5 // pred_region
        %s252 = ssub.s32 %s19, 1
        %s253 = sand.u32 %s72, 1
        %s254 = scalar_lea.sflag [#allocation6], %s253
        %s255 = sand.u32 %s72, 1
        %s256 = smul.addr %s255, 128
        %s257 = scalar_lea.vmem [#allocation5], %s256
        // Predicated region
        $region37: #{tpu_custom_call.1} parent=35 // pred_check
          %p258 = pneg %p85
        $region38: #{tpu_custom_call.1} parent=35 // pred_check_branch
          %260 = sbr.rel (%p258) target = $region40
        $region39: #{tpu_custom_call.1} parent=35 // pred_region
          %261 = dma.done %s254, 2048
        $region40: #{tpu_custom_call.1} parent=35 // pred_fallthru
          _
        %s262 = sand.u32 %s100, 1
        %s263 = scalar_lea.sflag [#allocation9], %s262
        %s264 = sand.u32 %s100, 1
        %s265 = smul.addr %s264, 128
        %s266 = scalar_lea.vmem [#allocation8], %s265
        // Predicated region
        $region41: #{tpu_custom_call.1} parent=35 // pred_check
          %p267 = pneg %p113
        $region42: #{tpu_custom_call.1} parent=35 // pred_check_branch
          %269 = sbr.rel (%p267) target = $region44
        $region43: #{tpu_custom_call.1} parent=35 // pred_region
          %270 = dma.done %s263, 2048
        $region44: #{tpu_custom_call.1} parent=35 // pred_fallthru
          _
        %p271 = scmp.lt.s32.totalorder %s28, 1
        %s272 = scalar_select %p271, %s28, 1
        %s273 = smul.addr %s272, 4
        %s274 = smul.addr %s273, 8
        %s275 = scalar_lea.vmem %s0, %s274
        %p276 = pneg %p57
        %p277 = pneg %p54
        %s278 = sand.u32 %s72, 1
        %s279 = scalar_lea.sflag [#allocation6], %s278
        %s280 = sand.u32 %s72, 1
        %s281 = smul.addr %s280, 128
        %s282 = scalar_lea.vmem [#allocation5], %s281
        %p283 = pneg %p85
        %p284 = pneg %p82
        %s285 = sand.u32 %s100, 1
        %s286 = scalar_lea.sflag [#allocation9], %s285
        %s287 = sand.u32 %s100, 1
        %s288 = smul.addr %s287, 128
        %s289 = scalar_lea.vmem [#allocation8], %s288
        %p290 = pneg %p113
        %p291 = pneg %p110
        %p292 = scmp.lt.s32.totalorder %s28, 1
        %s293 = scalar_select %p292, %s28, 1
        %s294 = smul.addr %s293, 4
        %s295 = smul.addr %s294, 8
        %s296 = scalar_lea.vmem %s3, %s295
        %p297 = pneg %p139
        %p298 = pneg %p136
        %p299 = pneg %p165
        %p300 = pneg %p162
        %s301 = sand.u32 %s152, 1
        %s302 = scalar_lea.sflag [#allocation7], %s301
        %s303 = sand.u32 %s152, 1
        %s304 = smul.addr %s303, 32
        %s305 = scalar_lea.vmem [#allocation10], %s304
        %p306 = scmp.lt.s32.totalorder %s28, 1
        %s307 = scalar_select %p306, %s28, 1
        %s308 = smul.addr %s307, 4
        %s309 = smul.addr %s308, 8
        %s310 = scalar_lea.vmem %s0, %s309
        %s311 = smul.u32 16, %s29
        %s312 = smul.u32 16, %s29
        %p313 = scmp.lt.s32.totalorder %s28, 1
        %s314 = scalar_select %p313, %s28, 1
        %s315 = smul.addr %s314, 4
        %s316 = smul.addr %s315, 8
        %s317 = scalar_lea.vmem %s3, %s316
        %p318 = scmp.eq.s32.totalorder %s29, 0
        // Predicated region
        $region45: #{tpu_custom_call.1} parent=35 // pred_check
          %p319 = pneg %p318
        $region46: #{tpu_custom_call.1} parent=35 // pred_check_branch
          %321 = sbr.rel (%p319) target = $region48
        $region47: #{tpu_custom_call.1} parent=35 // pred_region
          %vm322 = vcmask 7168
          %323 = vst.msk [vmem:[#allocation2] sm:$0xff] %vm322, -inf
          %324 = vst.msk [vmem:[#allocation2 + $0x8] sm:$0xff] %vm322, -inf
          %325 = vst.msk [vmem:[#allocation2 + $0x10] sm:$0xff] %vm322, -inf
          %326 = vst.msk [vmem:[#allocation2 + $0x18] sm:$0xff] %vm322, -inf
          %327 = vst.msk [vmem:[#allocation3] sm:$0xff] %vm322, 0.0
          %328 = vst.msk [vmem:[#allocation3 + $0x8] sm:$0xff] %vm322, 0.0
          %329 = vst.msk [vmem:[#allocation3 + $0x10] sm:$0xff] %vm322, 0.0
          %330 = vst.msk [vmem:[#allocation3 + $0x18] sm:$0xff] %vm322, 0.0
          %331 = vst [vmem:[#allocation4] sm:$0xff] 0.0
          %332 = vst [vmem:[#allocation4 + $0x8] sm:$0xff] 0.0
          %333 = vst [vmem:[#allocation4 + $0x10] sm:$0xff] 0.0
          %334 = vst [vmem:[#allocation4 + $0x18] sm:$0xff] 0.0
        $region48: #{tpu_custom_call.1} parent=35 // pred_fallthru
          _
        %v335 = vld [vmem:[%s310] sm:$0xff]
        %v336 = vld [vmem:[%s310 + $0x8] sm:$0xff]
        %v337 = vld [vmem:[%s310 + $0x10] sm:$0xff]
        %v338 = vld [vmem:[%s310 + $0x18] sm:$0xff]
        %v339 = vld [vmem:[%s257] sm:$0xff]
        %v340 = vld [vmem:[%s257 + $0x8] sm:$0xff]
        %v341 = vld [vmem:[%s257 + $0x10] sm:$0xff]
        %v342 = vld [vmem:[%s257 + $0x18] sm:$0xff]
        %v343 = vld [vmem:[%s257 + $0x20] sm:$0xff]
        %v344 = vld [vmem:[%s257 + $0x28] sm:$0xff]
        %v345 = vld [vmem:[%s257 + $0x30] sm:$0xff]
        %v346 = vld [vmem:[%s257 + $0x38] sm:$0xff]
        %v347 = vld [vmem:[%s257 + $0x40] sm:$0xff]
        %v348 = vld [vmem:[%s257 + $0x48] sm:$0xff]
        %v349 = vld [vmem:[%s257 + $0x50] sm:$0xff]
        %v350 = vld [vmem:[%s257 + $0x58] sm:$0xff]
        %v351 = vld [vmem:[%s257 + $0x60] sm:$0xff]
        %v352 = vld [vmem:[%s257 + $0x68] sm:$0xff]
        %v353 = vld [vmem:[%s257 + $0x70] sm:$0xff]
        %v354 = vld [vmem:[%s257 + $0x78] sm:$0xff]
        %v355 = vld [vmem:[%s266] sm:$0xff]
        %v356 = vld [vmem:[%s266 + $0x8] sm:$0xff]
        %v357 = vld [vmem:[%s266 + $0x10] sm:$0xff]
        %v358 = vld [vmem:[%s266 + $0x18] sm:$0xff]
        %v359 = vld [vmem:[%s266 + $0x20] sm:$0xff]
        %v360 = vld [vmem:[%s266 + $0x28] sm:$0xff]
        %v361 = vld [vmem:[%s266 + $0x30] sm:$0xff]
        %v362 = vld [vmem:[%s266 + $0x38] sm:$0xff]
        %v363 = vld [vmem:[%s266 + $0x40] sm:$0xff]
        %v364 = vld [vmem:[%s266 + $0x48] sm:$0xff]
        %v365 = vld [vmem:[%s266 + $0x50] sm:$0xff]
        %v366 = vld [vmem:[%s266 + $0x58] sm:$0xff]
        %v367 = vld [vmem:[%s266 + $0x60] sm:$0xff]
        %v368 = vld [vmem:[%s266 + $0x68] sm:$0xff]
        %v369 = vld [vmem:[%s266 + $0x70] sm:$0xff]
        %v370 = vld [vmem:[%s266 + $0x78] sm:$0xff]
        %371 = vmatprep.subr.mxu0 0.0
        %372 = vmatpush1.xpose.msra.mxu0 %v339
        %373 = vmatprep.subr.mxu0 0.0
        %374 = vmatpush1.xpose.msra.mxu0 %v340
        %375 = vmatprep.subr.mxu0 0.0
        %376 = vmatpush1.xpose.msra.mxu0 %v341
        %377 = vmatprep.subr.mxu0 0.0
        %378 = vmatpush1.xpose.msra.mxu0 %v342
        %379 = vmatprep.subr.mxu0 0.0
        %380 = vmatpush1.xpose.msra.mxu0 %v343
        %381 = vmatprep.subr.mxu0 0.0
        %382 = vmatpush1.xpose.msra.mxu0 %v344
        %383 = vmatprep.subr.mxu0 0.0
        %384 = vmatpush1.xpose.msra.mxu0 %v345
        %385 = vmatprep.subr.mxu0 0.0
        %386 = vmatpush1.xpose.msra.mxu0 %v346
        %387 = vmatprep.subr.mxu0 0.0
        %388 = vmatpush1.xpose.msra.mxu0 %v347
        %389 = vmatprep.subr.mxu0 0.0
        %390 = vmatpush1.xpose.msra.mxu0 %v348
        %391 = vmatprep.subr.mxu0 0.0
        %392 = vmatpush1.xpose.msra.mxu0 %v349
        %393 = vmatprep.subr.mxu0 0.0
        %394 = vmatpush1.xpose.msra.mxu0 %v350
        %395 = vmatprep.subr.mxu0 0.0
        %396 = vmatpush1.xpose.msra.mxu0 %v351
        %397 = vmatprep.subr.mxu0 0.0
        %398 = vmatpush1.xpose.msra.mxu0 %v352
        %399 = vmatprep.subr.mxu0 0.0
        %400 = vmatpush1.xpose.msra.mxu0 %v353
        %401 = vmatprep.subr.mxu0 0.0
        %402 = vmatpush1.xpose.msra.mxu0 %v354
        %403 = vmatprep.subr.mxu0 0.0
        %404 = vmatpush1.xpose.msra.mxu0 0.0
        %405 = vmatprep.subr.mxu0 0.0
        %406 = vmatpush1.xpose.msra.mxu0 0.0
        %407 = vmatprep.subr.mxu0 0.0
        %408 = vmatpush1.xpose.msra.mxu0 0.0
        %409 = vmatprep.subr.mxu0 0.0
        %410 = vmatpush1.xpose.msra.mxu0 0.0
        %411 = vmatprep.subr.mxu0 0.0
        %412 = vmatpush1.xpose.msra.mxu0 0.0
        %413 = vmatprep.subr.mxu0 0.0
        %414 = vmatpush1.xpose.msra.mxu0 0.0
        %415 = vmatprep.subr.mxu0 0.0
        %416 = vmatpush1.xpose.msra.mxu0 0.0
        %417 = vmatprep.subr.mxu0 0.0
        %418 = vmatpush1.xpose.msra.mxu0 0.0
        %419 = vmatprep.subr.mxu0 0.0
        %420 = vmatpush1.xpose.msra.mxu0 0.0
        %421 = vmatprep.subr.mxu0 0.0
        %422 = vmatpush1.xpose.msra.mxu0 0.0
        %423 = vmatprep.subr.mxu0 0.0
        %424 = vmatpush1.xpose.msra.mxu0 0.0
        %425 = vmatprep.subr.mxu0 0.0
        %426 = vmatpush1.xpose.msra.mxu0 0.0
        %427 = vmatprep.subr.mxu0 0.0
        %428 = vmatpush1.xpose.msra.mxu0 0.0
        %429 = vmatprep.subr.mxu0 0.0
        %430 = vmatpush1.xpose.msra.mxu0 0.0
        %431 = vmatprep.subr.mxu0 0.0
        %432 = vmatpush1.xpose.msra.mxu0 0.0
        %433 = vmatprep.subr.mxu0 0.0
        %434 = vmatpush1.xpose.msra.mxu0 0.0
        %435 = vmatprep.mubr.f32.mxu0 0.0
        %436 = vmatmul.mubr.f32.gmra.mrb[0].mxu0 %v335
        %v437 = vpop.f32.mrb[0].mxu0
        %v438 = vadd.f32 0.0, %v437
        %v439 = vpop.f32.mrb[0].mxu0
        %440 = vmatprep.mubr.f32.mxu0 0.0
        %441 = vmatmul.mubr.f32.gmra.mrb[0].mxu0 %v336
        %v442 = vpop.f32.mrb[0].mxu0
        %v443 = vadd.f32 0.0, %v442
        %v444 = vpop.f32.mrb[0].mxu0
        %445 = vmatprep.mubr.f32.mxu0 0.0
        %446 = vmatmul.mubr.f32.gmra.mrb[0].mxu0 %v337
        %v447 = vpop.f32.mrb[0].mxu0
        %v448 = vadd.f32 0.0, %v447
        %v449 = vpop.f32.mrb[0].mxu0
        %450 = vmatprep.mubr.f32.mxu0 0.0
        %451 = vmatmul.mubr.f32.gmra.mrb[0].mxu0 %v338
        %v452 = vpop.f32.mrb[0].mxu0
        %v453 = vadd.f32 0.0, %v452
        %v454 = vpop.f32.mrb[0].mxu0
        %455 = vdwg.mxu0
        %v456 = vmul.f32 %v438, 0.088388346
        %v457 = vmul.f32 %v443, 0.088388346
        %v458 = vmul.f32 %v448, 0.088388346
        %v459 = vmul.f32 %v453, 0.088388346
        %v460 = vld [vmem:[%s317] sm:$0xff]
        %v461 = vld [vmem:[%s317 + $0x8] sm:$0xff]
        %v462 = vld [vmem:[%s317 + $0x10] sm:$0xff]
        %v463 = vld [vmem:[%s317 + $0x18] sm:$0xff]
        %s464 = smul.u32 %s29, 128
        %v465 = vlaneseq
        %v466 = vand.u32 %v465, 127
        %v467 = vstv %s464
        %v468 = vadd.s32 %v467, %v466
        %469 = vset.pattern.permute.xlu0 0
        %470 = vperm.xlu0 %469, %v460
        %v471 = vpop.permute.xlu0 %470
        %472 = vset.pattern.permute.xlu0 0
        %473 = vperm.xlu0 %472, %v461
        %v474 = vpop.permute.xlu0 %473
        %475 = vset.pattern.permute.xlu0 0
        %476 = vperm.xlu0 %475, %v462
        %v477 = vpop.permute.xlu0 %476
        %478 = vset.pattern.permute.xlu0 0
        %479 = vperm.xlu0 %478, %v463
        %v480 = vpop.permute.xlu0 %479
        %vm481 = vcmp.le.s32.totalorder %v468, %v471
        %vm482 = vcmp.le.s32.totalorder %v468, %v474
        %vm483 = vcmp.le.s32.totalorder %v468, %v477
        %vm484 = vcmp.le.s32.totalorder %v468, %v480
        %v485 = vsel %vm481, %v456, -inf
        %v486 = vsel %vm482, %v457, -inf
        %v487 = vsel %vm483, %v458, -inf
        %v488 = vsel %vm484, %v459, -inf
        %v489 = vld [vmem:[#allocation2] sm:$0xff]
        %v490 = vld [vmem:[#allocation2 + $0x8] sm:$0xff]
        %v491 = vld [vmem:[#allocation2 + $0x10] sm:$0xff]
        %v492 = vld [vmem:[#allocation2 + $0x18] sm:$0xff]
        %493 = vmax.xlane.f32.xlu0 %v485
        %v494 = vpop.xlane.xlu0 %493
        %495 = vmax.xlane.f32.xlu0 %v486
        %v496 = vpop.xlane.xlu0 %495
        %497 = vmax.xlane.f32.xlu0 %v487
        %v498 = vpop.xlane.xlu0 %497
        %499 = vmax.xlane.f32.xlu0 %v488
        %v500 = vpop.xlane.xlu0 %499
        %v501 = vmax.f32 %v489, %v494
        %v502 = vmax.f32 %v490, %v496
        %v503 = vmax.f32 %v491, %v498
        %v504 = vmax.f32 %v492, %v500
        %v505 = vsub.f32 %v489, %v501
        %v506 = vsub.f32 %v490, %v502
        %v507 = vsub.f32 %v491, %v503
        %v508 = vsub.f32 %v492, %v504
        %v509 = vmul.f32 %v505, 1.442695
        %v510 = vpow.pop %v509
        %v511 = vmul.f32 %v506, 1.442695
        %v512 = vpow.pop %v511
        %v513 = vmul.f32 %v507, 1.442695
        %v514 = vpow.pop %v513
        %v515 = vmul.f32 %v508, 1.442695
        %v516 = vpow.pop %v515
        %518 = vset.pattern.permute.xlu0 0
        %519 = vperm.xlu0 %518, %v501
        %v520 = vpop.permute.xlu0 %519
        %523 = vset.pattern.permute.xlu0 0
        %524 = vperm.xlu0 %523, %v502
        %v525 = vpop.permute.xlu0 %524
        %528 = vset.pattern.permute.xlu0 0
        %529 = vperm.xlu0 %528, %v503
        %v530 = vpop.permute.xlu0 %529
        %533 = vset.pattern.permute.xlu0 0
        %534 = vperm.xlu0 %533, %v504
        %v535 = vpop.permute.xlu0 %534
        %v537 = vsub.f32 %v485, %v520
        %v538 = vsub.f32 %v486, %v525
        %v539 = vsub.f32 %v487, %v530
        %v540 = vsub.f32 %v488, %v535
        %v541 = vmul.f32 %v537, 1.442695
        %v542 = vpow.pop %v541
        %v543 = vmul.f32 %v538, 1.442695
        %v544 = vpow.pop %v543
        %v545 = vmul.f32 %v539, 1.442695
        %v546 = vpow.pop %v545
        %v547 = vmul.f32 %v540, 1.442695
        %v548 = vpow.pop %v547
        %v549 = vld [vmem:[#allocation3] sm:$0xff]
        %v550 = vld [vmem:[#allocation3 + $0x8] sm:$0xff]
        %v551 = vld [vmem:[#allocation3 + $0x10] sm:$0xff]
        %v552 = vld [vmem:[#allocation3 + $0x18] sm:$0xff]
        %v553 = vmul.f32 %v510, %v549
        %v554 = vmul.f32 %v512, %v550
        %v555 = vmul.f32 %v514, %v551
        %v556 = vmul.f32 %v516, %v552
        %557 = vadd.xlane.f32.xlu0 %v542
        %v558 = vpop.xlane.xlu0 %557
        %559 = vadd.xlane.f32.xlu0 %v544
        %v560 = vpop.xlane.xlu0 %559
        %561 = vadd.xlane.f32.xlu0 %v546
        %v562 = vpop.xlane.xlu0 %561
        %563 = vadd.xlane.f32.xlu0 %v548
        %v564 = vpop.xlane.xlu0 %563
        %v565 = vadd.f32 %v553, %v558
        %v566 = vadd.f32 %v554, %v560
        %v567 = vadd.f32 %v555, %v562
        %v568 = vadd.f32 %v556, %v564
        %vm569 = vcmask 7168
        %570 = vst.msk [vmem:[#allocation3] sm:$0xff] %vm569, %v565
        %571 = vst.msk [vmem:[#allocation3 + $0x8] sm:$0xff] %vm569, %v566
        %572 = vst.msk [vmem:[#allocation3 + $0x10] sm:$0xff] %vm569, %v567
        %573 = vst.msk [vmem:[#allocation3 + $0x18] sm:$0xff] %vm569, %v568
        %v574 = vld [vmem:[#allocation4] sm:$0xff]
        %v575 = vld [vmem:[#allocation4 + $0x8] sm:$0xff]
        %v576 = vld [vmem:[#allocation4 + $0x10] sm:$0xff]
        %v577 = vld [vmem:[#allocation4 + $0x18] sm:$0xff]
        %579 = vset.pattern.permute.xlu0 0
        %580 = vperm.xlu0 %579, %v510
        %v581 = vpop.permute.xlu0 %580
        %584 = vset.pattern.permute.xlu0 0
        %585 = vperm.xlu0 %584, %v512
        %v586 = vpop.permute.xlu0 %585
        %589 = vset.pattern.permute.xlu0 0
        %590 = vperm.xlu0 %589, %v514
        %v591 = vpop.permute.xlu0 %590
        %594 = vset.pattern.permute.xlu0 0
        %595 = vperm.xlu0 %594, %v516
        %v596 = vpop.permute.xlu0 %595
        %v598 = vmul.f32 %v581, %v574
        %v599 = vmul.f32 %v586, %v575
        %v600 = vmul.f32 %v591, %v576
        %v601 = vmul.f32 %v596, %v577
        %602 = vmatprep.subr.mxu0 0.0
        %603 = vmatpush1.msra.mxu0 %v355
        %604 = vmatprep.subr.mxu0 0.0
        %605 = vmatpush1.msra.mxu0 %v356
        %606 = vmatprep.subr.mxu0 0.0
        %607 = vmatpush1.msra.mxu0 %v357
        %608 = vmatprep.subr.mxu0 0.0
        %609 = vmatpush1.msra.mxu0 %v358
        %610 = vmatprep.subr.mxu0 0.0
        %611 = vmatpush1.msra.mxu0 %v359
        %612 = vmatprep.subr.mxu0 0.0
        %613 = vmatpush1.msra.mxu0 %v360
        %614 = vmatprep.subr.mxu0 0.0
        %615 = vmatpush1.msra.mxu0 %v361
        %616 = vmatprep.subr.mxu0 0.0
        %617 = vmatpush1.msra.mxu0 %v362
        %618 = vmatprep.subr.mxu0 0.0
        %619 = vmatpush1.msra.mxu0 %v363
        %620 = vmatprep.subr.mxu0 0.0
        %621 = vmatpush1.msra.mxu0 %v364
        %622 = vmatprep.subr.mxu0 0.0
        %623 = vmatpush1.msra.mxu0 %v365
        %624 = vmatprep.subr.mxu0 0.0
        %625 = vmatpush1.msra.mxu0 %v366
        %626 = vmatprep.subr.mxu0 0.0
        %627 = vmatpush1.msra.mxu0 %v367
        %628 = vmatprep.subr.mxu0 0.0
        %629 = vmatpush1.msra.mxu0 %v368
        %630 = vmatprep.subr.mxu0 0.0
        %631 = vmatpush1.msra.mxu0 %v369
        %632 = vmatprep.subr.mxu0 0.0
        %633 = vmatpush1.msra.mxu0 %v370
        %634 = vmatprep.subr.mxu0 0.0
        %635 = vmatpush1.msra.mxu0 0.0
        %636 = vmatprep.subr.mxu0 0.0
        %637 = vmatpush1.msra.mxu0 0.0
        %638 = vmatprep.subr.mxu0 0.0
        %639 = vmatpush1.msra.mxu0 0.0
        %640 = vmatprep.subr.mxu0 0.0
        %641 = vmatpush1.msra.mxu0 0.0
        %642 = vmatprep.subr.mxu0 0.0
        %643 = vmatpush1.msra.mxu0 0.0
        %644 = vmatprep.subr.mxu0 0.0
        %645 = vmatpush1.msra.mxu0 0.0
        %646 = vmatprep.subr.mxu0 0.0
        %647 = vmatpush1.msra.mxu0 0.0
        %648 = vmatprep.subr.mxu0 0.0
        %649 = vmatpush1.msra.mxu0 0.0
        %650 = vmatprep.subr.mxu0 0.0
        %651 = vmatpush1.msra.mxu0 0.0
        %652 = vmatprep.subr.mxu0 0.0
        %653 = vmatpush1.msra.mxu0 0.0
        %654 = vmatprep.subr.mxu0 0.0
        %655 = vmatpush1.msra.mxu0 0.0
        %656 = vmatprep.subr.mxu0 0.0
        %657 = vmatpush1.msra.mxu0 0.0
        %658 = vmatprep.subr.mxu0 0.0
        %659 = vmatpush1.msra.mxu0 0.0
        %660 = vmatprep.subr.mxu0 0.0
        %661 = vmatpush1.msra.mxu0 0.0
        %662 = vmatprep.subr.mxu0 0.0
        %663 = vmatpush1.msra.mxu0 0.0
        %664 = vmatprep.subr.mxu0 0.0
        %665 = vmatpush1.msra.mxu0 0.0
        %666 = vmatprep.mubr.f32.mxu0 0.0
        %667 = vmatmul.mubr.f32.gmra.mrb[0].mxu0 %v542
        %v668 = vpop.f32.mrb[0].mxu0
        %v669 = vadd.f32 0.0, %v668
        %v670 = vpop.f32.mrb[0].mxu0
        %671 = vmatprep.mubr.f32.mxu0 0.0
        %672 = vmatmul.mubr.f32.gmra.mrb[0].mxu0 %v544
        %v673 = vpop.f32.mrb[0].mxu0
        %v674 = vadd.f32 0.0, %v673
        %v675 = vpop.f32.mrb[0].mxu0
        %676 = vmatprep.mubr.f32.mxu0 0.0
        %677 = vmatmul.mubr.f32.gmra.mrb[0].mxu0 %v546
        %v678 = vpop.f32.mrb[0].mxu0
        %v679 = vadd.f32 0.0, %v678
        %v680 = vpop.f32.mrb[0].mxu0
        %681 = vmatprep.mubr.f32.mxu0 0.0
        %682 = vmatmul.mubr.f32.gmra.mrb[0].mxu0 %v548
        %v683 = vpop.f32.mrb[0].mxu0
        %v684 = vadd.f32 0.0, %v683
        %v685 = vpop.f32.mrb[0].mxu0
        %686 = vdwg.mxu0
        %v687 = vadd.f32 %v598, %v669
        %v688 = vadd.f32 %v599, %v674
        %v689 = vadd.f32 %v600, %v679
        %v690 = vadd.f32 %v601, %v684
        %691 = vst [vmem:[#allocation4] sm:$0xff] %v687
        %692 = vst [vmem:[#allocation4 + $0x8] sm:$0xff] %v688
        %693 = vst [vmem:[#allocation4 + $0x10] sm:$0xff] %v689
        %694 = vst [vmem:[#allocation4 + $0x18] sm:$0xff] %v690
        %695 = vst.msk [vmem:[#allocation2] sm:$0xff] %vm569, %v501
        %696 = vst.msk [vmem:[#allocation2 + $0x8] sm:$0xff] %vm569, %v502
        %697 = vst.msk [vmem:[#allocation2 + $0x10] sm:$0xff] %vm569, %v503
        %698 = vst.msk [vmem:[#allocation2 + $0x18] sm:$0xff] %vm569, %v504
        %p699 = scmp.eq.s32.totalorder %s29, 1
        // Predicated region
        $region49: #{tpu_custom_call.1} parent=35 // pred_check
          %p700 = pneg %p699
        $region50: #{tpu_custom_call.1} parent=35 // pred_check_branch
          %702 = sbr.rel (%p700) target = $region52
        $region51: #{tpu_custom_call.1} parent=35 // pred_region
          %v703 = vld [vmem:[#allocation4] sm:$0xff]
          %v704 = vld [vmem:[#allocation4 + $0x8] sm:$0xff]
          %v705 = vld [vmem:[#allocation4 + $0x10] sm:$0xff]
          %v706 = vld [vmem:[#allocation4 + $0x18] sm:$0xff]
          %v707 = vld [vmem:[#allocation3] sm:$0xff]
          %v708 = vld [vmem:[#allocation3 + $0x8] sm:$0xff]
          %v709 = vld [vmem:[#allocation3 + $0x10] sm:$0xff]
          %v710 = vld [vmem:[#allocation3 + $0x18] sm:$0xff]
          %712 = vset.pattern.permute.xlu0 0
          %713 = vperm.xlu0 %712, %v707
          %v714 = vpop.permute.xlu0 %713
          %717 = vset.pattern.permute.xlu0 0
          %718 = vperm.xlu0 %717, %v708
          %v719 = vpop.permute.xlu0 %718
          %722 = vset.pattern.permute.xlu0 0
          %723 = vperm.xlu0 %722, %v709
          %v724 = vpop.permute.xlu0 %723
          %727 = vset.pattern.permute.xlu0 0
          %728 = vperm.xlu0 %727, %v710
          %v729 = vpop.permute.xlu0 %728
          %v731 = vrcp.pop %v714
          %v732 = vmul.f32 %v703, %v731
          %v733 = vrcp.pop %v719
          %v734 = vmul.f32 %v704, %v733
          %v735 = vrcp.pop %v724
          %v736 = vmul.f32 %v705, %v735
          %v737 = vrcp.pop %v729
          %v738 = vmul.f32 %v706, %v737
          %739 = vst [vmem:[%s305] sm:$0xff] %v732
          %740 = vst [vmem:[%s305 + $0x8] sm:$0xff] %v734
          %741 = vst [vmem:[%s305 + $0x10] sm:$0xff] %v736
          %742 = vst [vmem:[%s305 + $0x18] sm:$0xff] %v738
        $region52: #{tpu_custom_call.1} parent=35 // pred_fallthru
          _
        %s743 = sand.u32 %s152, 1
        %s744 = scalar_lea.sflag [#allocation7], %s743
        %s745 = sand.u32 %s152, 1
        %s746 = smul.addr %s745, 32
        %s747 = scalar_lea.vmem [#allocation10], %s746
        // Predicated region
        $region53: #{tpu_custom_call.1} parent=35 // pred_check
          %p748 = pneg %p162
        $region54: #{tpu_custom_call.1} parent=35 // pred_check_branch
          %750 = sbr.rel (%p748) target = $region56
        $region55: #{tpu_custom_call.1} parent=35 // pred_region
          %s752 = ssub.s32 512, 512
          %753 = vsyncadd %s744, %s752
          %s754 = smul.addr %s28, 4
          %s755 = smul.addr %s754, 128
          %s756 = scalar_lea.hbm %s4, %s755
          %s757 = sshll.u32 %s747, 4
          %s758 = int_to_ptr.vmem [resolvable:$true] %s757
          %763 = dma.vmem_to_hbm [thread:$0]  %s758, 512, %s756, %s744, 128, 128, 8
        $region56: #{tpu_custom_call.1} parent=35 // pred_fallthru
          _
      $region36: #{tpu_custom_call.1} parent=5 // pred_fallthru
        _
      %p764 = scmp.le.s32.totalorder 2, %s19
      // Predicated region
      $region57: #{tpu_custom_call.1} parent=5 // pred_check
        %p765 = pneg %p764
      $region58: #{tpu_custom_call.1} parent=5 // pred_check_branch
        %767 = sbr.rel (%p765) target = $region60
      $region59: #{tpu_custom_call.1} parent=5 // pred_region
        %s768 = ssub.s32 %s19, 2
        // Predicated region
        $region61: #{tpu_custom_call.1} parent=59 // pred_check
          %p769 = pneg %p168
        $region62: #{tpu_custom_call.1} parent=59 // pred_check_branch
          %771 = sbr.rel (%p769) target = $region64
        $region63: #{tpu_custom_call.1} parent=59 // pred_region
          %s772 = sand.u32 %s153, 1
          %s773 = scalar_lea.sflag [#allocation7], %s772
          %s774 = sand.u32 %s153, 1
          %s775 = smul.addr %s774, 32
          %s776 = scalar_lea.vmem [#allocation10], %s775
          %777 = dma.done %s773, 512
        $region64: #{tpu_custom_call.1} parent=59 // pred_fallthru
          _
      $region60: #{tpu_custom_call.1} parent=5 // pred_fallthru
        _
    $region6: #{tpu_custom_call.1} parent=1 // loop_footer
      %s23 = sadd.s32 1, %s19
    $region7: #{tpu_custom_call.1} parent=1 // loop_footer_branch
      %18 = sbr.rel target = $region3
    $region8: #{tpu_custom_call.1} parent=1 // loop_exit
      _
    %778 = vsyncpa [#allocation6], 1
    %s779 = scalar_lea.sflag [#allocation6], 1
    %780 = vsyncpa %s779, 1
    %781 = vsyncpa [#allocation9], 1
    %s782 = scalar_lea.sflag [#allocation9], 1
    %783 = vsyncpa %s782, 1
    %784 = vsyncpa [#allocation7], 1
    %s785 = scalar_lea.sflag [#allocation7], 1
    %786 = vsyncpa %s785, 1

</llo_original>
